<compile_context>
chip_gen: v6e
topology: v6e:2x2x1
jax: 0.10.0
libtpu: 0.0.40
codegen_flags: <defaults>
</compile_context>

<pallas_src>
import functools

import numpy as np
import jax
import jax.numpy as jnp
from jax.experimental import pallas as pl
from jax.experimental.pallas import tpu as pltpu

_LN_EPS = 1e-5
_INV_SQRT2 = 0.7071067811865476


# ----------------------------- shared math (kernel + reference) -------------------- #

def _gelu_exact(x):
    # PyTorch nn.GELU default (erf-based, exact)
    return 0.5 * x * (1.0 + jax.lax.erf(x * _INV_SQRT2))


def _layernorm(x, gamma, beta):
    mu = jnp.mean(x, axis=-1, keepdims=True)
    xc = x - mu
    var = jnp.mean(xc * xc, axis=-1, keepdims=True)
    return xc * jax.lax.rsqrt(var + _LN_EPS) * gamma + beta


# ----------------------------- fused Pallas kernel ---------------------------------- #

def _contextualizer_kernel(
    x_ref, sel_t_ref, sel_f_ref, rep_f_ref,
    g_ref, b_ref,
    cw1_ref, cb1_ref, cw2_ref, cb2_ref,
    mw1_ref, mb1_ref, mw2_ref, mb2_ref,
    o_ref,
):
    """One batch element per grid step; all layers looped in-kernel with the activation
    carried as a value. Weights are full (L, ...) VMEM-resident blocks indexed by l."""
    num_layers = cw1_ref.shape[0]

    sel_t = sel_t_ref[...]          # (N, D) 0/1: token that the d-th downsample pick uses
    sel_f = sel_f_ref[...]          # (D, D) 0/1: feature permutation of the picks
    rep_f = rep_f_ref[...]          # (D, D) 0/1: nearest-repeat for the upsample

    def one_layer(l, a):
        gamma = g_ref[l]            # (1, D)  (one LayerNorm shared by both uses, as in torch)
        beta = b_ref[l]             # (1, D)

        # ---- x = norm(x) ----------------------------------------------------------
        nx = _layernorm(a, gamma, beta)                                     # (N, D)

        # ---- context = downsample(reshape(x, [1, N*D]))   (nearest, scale 1/N) -----
        # ctx[d] = nx_flat[d*N] = nx[(d*N)//D, (d*N)%D]; exact 0/1 selection.
        picked = jnp.dot(nx, sel_f, preferred_element_type=jnp.float32)     # (N, D)
        ctx = jnp.sum(picked * sel_t, axis=0, keepdims=True)                # (1, D)

        # ---- context = context_mlp(context) -----------------------------------------
        h = _gelu_exact(
            jnp.dot(ctx, cw1_ref[l], preferred_element_type=jnp.float32) + cb1_ref[l])
        c2 = jnp.dot(h, cw2_ref[l], preferred_element_type=jnp.float32) + cb2_ref[l]

        # ---- upsample (nearest, scale N) back to (N, D) + residual ------------------
        # up[t, f] = c2[(t*D + f)//N]  ==  (SelT * c2) @ RepF
        up = jnp.dot(sel_t * c2, rep_f, preferred_element_type=jnp.float32)  # (N, D)
        x1 = up + a

        # ---- x = norm(x) ; out = mlp(x) + res ----------------------------------------
        nx2 = _layernorm(x1, gamma, beta)
        h2 = _gelu_exact(
            jnp.dot(nx2, mw1_ref[l], preferred_element_type=jnp.float32) + mb1_ref[l])
        return jnp.dot(h2, mw2_ref[l], preferred_element_type=jnp.float32) + mb2_ref[l] + x1

    o_ref[0] = jax.lax.fori_loop(0, num_layers, one_layer, x_ref[0])


# ----------------------------- wrapper / pallas_call plumbing ----------------------- #

def _selection_masks(num_tokens, d_model):
    """Constant 0/1 matrices implementing the nearest down/up-sample of the flat view."""
    N, D = num_tokens, d_model
    # TODO(synk): the factorized in-kernel upsample requires d_model % num_tokens == 0
    # (the common configuration); the general non-divisible case is not implemented.
    assert D % N == 0, "d_model must be a multiple of num_tokens for the fused kernel"
    K = D // N
    d = np.arange(D)
    t_pick = (d * N) // D                  # token index of the d-th downsample pick
    f_pick = (d * N) % D                   # feature index of the d-th downsample pick
    sel_t = (np.arange(N)[:, None] == t_pick[None, :]).astype(np.float32)   # (N, D)
    sel_f = (np.arange(D)[:, None] == f_pick[None, :]).astype(np.float32)   # (D, D)
    rep_f = ((d[:, None] % K) == (d[None, :] // N)).astype(np.float32)      # (D, D)
    return jnp.asarray(sel_t), jnp.asarray(sel_f), jnp.asarray(rep_f)


@functools.partial(jax.jit, static_argnames=("num_tokens",))
def contextualizer_forward(x, params, *, num_tokens):
    B, N, D = x.shape
    assert N == num_tokens, "num_tokens must equal the token dimension (as in the module)"
    sel_t, sel_f, rep_f = _selection_masks(num_tokens, D)

    def batch_map(b):
        return (b, 0, 0)

    def full_spec(arr):
        # Whole array as one block with a constant block index: DMA'd once, VMEM-resident
        # across all grid steps (Pallas skips the copy when the block index is unchanged).
        nd = arr.ndim
        return pl.BlockSpec(tuple(arr.shape), lambda b: (0,) * nd)

    in_specs = [
        pl.BlockSpec((1, N, D), batch_map),              # x: one batch element per step
        full_spec(sel_t), full_spec(sel_f), full_spec(rep_f),
        full_spec(params["gamma"]), full_spec(params["beta"]),
        full_spec(params["cw1"]), full_spec(params["cb1"]),
        full_spec(params["cw2"]), full_spec(params["cb2"]),
        full_spec(params["mw1"]), full_spec(params["mb1"]),
        full_spec(params["mw2"]), full_spec(params["mb2"]),
    ]

    grid_spec = pltpu.PrefetchScalarGridSpec(
        num_scalar_prefetch=0,
        grid=(B,),                                       # batch only; layers loop in-kernel
        in_specs=in_specs,
        out_specs=pl.BlockSpec((1, N, D), batch_map),
    )

    return pl.pallas_call(
        _contextualizer_kernel,
        grid_spec=grid_spec,
        out_shape=jax.ShapeDtypeStruct((B, N, D), jnp.float32),
        compiler_params=pltpu.CompilerParams(
            dimension_semantics=("parallel",),           # v7x: 2 TensorCores split the batch
            vmem_limit_bytes=32 * 1024 * 1024,           # tiny working set; fits v7x's 64 MiB
        ),
    )(x, sel_t, sel_f, rep_f,
      params["gamma"], params["beta"],
      params["cw1"], params["cb1"], params["cw2"], params["cb2"],
      params["mw1"], params["mb1"], params["mw2"], params["mb2"])


# ----------------------------- params & pure-JAX reference -------------------------- #

def init_params(key, num_layers, d_model, d_ffn):
    """Deterministic synthetic parameters mirroring the PyTorch shapes, stacked on a
    leading (num_layers, ...) axis. Linear weights are stored (in, out) = torch weight.T;
    the LayerNorm is shared between both uses inside a block, as in the module."""
    def lin(k, fan_in, shape):
        bound = 1.0 / float(fan_in) ** 0.5
        return jax.random.uniform(k, shape, jnp.float32, -bound, bound)

    ks = jax.random.split(key, 8)
    L, D, F = num_layers, d_model, d_ffn
    return {
        "gamma": jnp.ones((L, 1, D), jnp.float32),
        "beta": jnp.zeros((L, 1, D), jnp.float32),
        "cw1": lin(ks[0], D, (L, D, F)),
        "cb1": lin(ks[1], D, (L, 1, F)),
        "cw2": lin(ks[2], F, (L, F, D)),
        "cb2": lin(ks[3], F, (L, 1, D)),
        "mw1": lin(ks[4], D, (L, D, F)),
        "mb1": lin(ks[5], D, (L, 1, F)),
        "mw2": lin(ks[6], F, (L, F, D)),
        "mb2": lin(ks[7], F, (L, 1, D)),
    }


def reference_forward(x, params, num_tokens):
    """Pure-JAX (XLA) reference matching the PyTorch module, for correctness checking."""
    B, N, D = x.shape
    L = params["cw1"].shape[0]
    for l in range(L):
        g, bt = params["gamma"][l], params["beta"][l]
        res = x
        nx = _layernorm(x, g, bt)
        ctx = nx.reshape(B, N * D)[:, ::num_tokens]                       # nearest downsample
        h = _gelu_exact(ctx @ params["cw1"][l] + params["cb1"][l])
        c2 = h @ params["cw2"][l] + params["cb2"][l]
        up = jnp.repeat(c2, num_tokens, axis=-1).reshape(B, N, D)         # nearest upsample
        x1 = up + res
        nx2 = _layernorm(x1, g, bt)
        h2 = _gelu_exact(jnp.einsum("bnd,df->bnf", nx2, params["mw1"][l]) + params["mb1"][l])
        x = jnp.einsum("bnf,fd->bnd", h2, params["mw2"][l]) + params["mb2"][l] + x1
    return x


# ----------------------------- main -------------------------------------------------- #

if __name__ == "__main__":
    # Contextualizer(d_model=32, d_ffn=64, num_layers=2, dropout=0.0, num_tokens=8)
    B, NUM_TOKENS, D_MODEL, D_FFN, NUM_LAYERS = 2, 8, 32, 64, 2

    key = jax.random.PRNGKey(0)
    kx, kp = jax.random.split(key)
    x = jax.random.normal(kx, (B, NUM_TOKENS, D_MODEL), jnp.float32)
    params = init_params(kp, NUM_LAYERS, D_MODEL, D_FFN)

    out = contextualizer_forward(x, params, num_tokens=NUM_TOKENS)
    jax.block_until_ready(out)

    ref = reference_forward(x, params, NUM_TOKENS)
    max_err = float(jnp.max(jnp.abs(out - ref)))

    assert out.shape == (B, NUM_TOKENS, D_MODEL)
    assert out.dtype == jnp.float32
    assert bool(jnp.all(jnp.isfinite(out)))
    assert max_err < 1e-3, f"mismatch vs reference: max abs err {max_err}"
    print("KERNEL_OK")
</pallas_src>

<mosaic_0001>
module attributes {stable_mosaic.version = 11 : i64} {
  func.func @_contextualizer_kernel(%arg0: i32, %arg1: memref<1x8x32xf32, #tpu.memory_space<vmem>>, %arg2: memref<8x32xf32, #tpu.memory_space<vmem>>, %arg3: memref<32x32xf32, #tpu.memory_space<vmem>>, %arg4: memref<32x32xf32, #tpu.memory_space<vmem>>, %arg5: memref<2x1x32xf32, #tpu.memory_space<vmem>>, %arg6: memref<2x1x32xf32, #tpu.memory_space<vmem>>, %arg7: memref<2x32x64xf32, #tpu.memory_space<vmem>>, %arg8: memref<2x1x64xf32, #tpu.memory_space<vmem>>, %arg9: memref<2x64x32xf32, #tpu.memory_space<vmem>>, %arg10: memref<2x1x32xf32, #tpu.memory_space<vmem>>, %arg11: memref<2x32x64xf32, #tpu.memory_space<vmem>>, %arg12: memref<2x1x64xf32, #tpu.memory_space<vmem>>, %arg13: memref<2x64x32xf32, #tpu.memory_space<vmem>>, %arg14: memref<2x1x32xf32, #tpu.memory_space<vmem>>, %arg15: memref<1x8x32xf32, #tpu.memory_space<vmem>>) attributes {dimension_semantics = [#tpu.dimension_semantics<parallel>], iteration_bounds = array<i64: 2>, scalar_prefetch = 0 : i64, scratch_operands = 0 : i64, tpu.core_type = #tpu.core_type<tc>, window_params = [{transform_indices = @transform_0, window_bounds = array<i64: 1, 8, 32>}, {pipeline_mode = #tpu.pipeline_mode<synchronous>, transform_indices = @transform_1, window_bounds = array<i64: 8, 32>}, {pipeline_mode = #tpu.pipeline_mode<synchronous>, transform_indices = @transform_2, window_bounds = array<i64: 32, 32>}, {pipeline_mode = #tpu.pipeline_mode<synchronous>, transform_indices = @transform_3, window_bounds = array<i64: 32, 32>}, {pipeline_mode = #tpu.pipeline_mode<synchronous>, transform_indices = @transform_4, window_bounds = array<i64: 2, 1, 32>}, {pipeline_mode = #tpu.pipeline_mode<synchronous>, transform_indices = @transform_5, window_bounds = array<i64: 2, 1, 32>}, {pipeline_mode = #tpu.pipeline_mode<synchronous>, transform_indices = @transform_6, window_bounds = array<i64: 2, 32, 64>}, {pipeline_mode = #tpu.pipeline_mode<synchronous>, transform_indices = @transform_7, window_bounds = array<i64: 2, 1, 64>}, {pipeline_mode = #tpu.pipeline_mode<synchronous>, transform_indices = @transform_8, window_bounds = array<i64: 2, 64, 32>}, {pipeline_mode = #tpu.pipeline_mode<synchronous>, transform_indices = @transform_9, window_bounds = array<i64: 2, 1, 32>}, {pipeline_mode = #tpu.pipeline_mode<synchronous>, transform_indices = @transform_10, window_bounds = array<i64: 2, 32, 64>}, {pipeline_mode = #tpu.pipeline_mode<synchronous>, transform_indices = @transform_11, window_bounds = array<i64: 2, 1, 64>}, {pipeline_mode = #tpu.pipeline_mode<synchronous>, transform_indices = @transform_12, window_bounds = array<i64: 2, 64, 32>}, {pipeline_mode = #tpu.pipeline_mode<synchronous>, transform_indices = @transform_13, window_bounds = array<i64: 2, 1, 32>}, {transform_indices = @transform_14, window_bounds = array<i64: 1, 8, 32>}]} {
    %c0 = arith.constant 0 : index
    %c0_0 = arith.constant 0 : index
    %0 = vector.load %arg2[%c0, %c0_0] : memref<8x32xf32, #tpu.memory_space<vmem>>, vector<8x32xf32>
    %c0_1 = arith.constant 0 : index
    %c0_2 = arith.constant 0 : index
    %1 = vector.load %arg3[%c0_1, %c0_2] : memref<32x32xf32, #tpu.memory_space<vmem>>, vector<32x32xf32>
    %c0_3 = arith.constant 0 : index
    %c0_4 = arith.constant 0 : index
    %2 = vector.load %arg4[%c0_3, %c0_4] : memref<32x32xf32, #tpu.memory_space<vmem>>, vector<32x32xf32>
    %c0_5 = arith.constant 0 : index
    %c0_6 = arith.constant 0 : index
    %c0_7 = arith.constant 0 : index
    %3 = vector.load %arg1[%c0_5, %c0_6, %c0_7] : memref<1x8x32xf32, #tpu.memory_space<vmem>>, vector<1x8x32xf32>
    %4 = vector.shape_cast %3 : vector<1x8x32xf32> to vector<8x32xf32>
    %c0_i32 = arith.constant 0 : i32
    %c2_i32 = arith.constant 2 : i32
    %5 = arith.addi %c0_i32, %c2_i32 : i32
    %c1_i32 = arith.constant 1 : i32
    %6 = scf.for %arg16 = %c0_i32 to %5 step %c1_i32 iter_args(%arg17 = %4) -> (vector<8x32xf32>)  : i32 {
      %10 = arith.index_cast %arg16 : i32 to index
      %c0_12 = arith.constant 0 : index
      %c0_13 = arith.constant 0 : index
      %11 = vector.load %arg5[%10, %c0_12, %c0_13] : memref<2x1x32xf32, #tpu.memory_space<vmem>>, vector<1x1x32xf32>
      %12 = vector.shape_cast %11 : vector<1x1x32xf32> to vector<1x32xf32>
      %13 = arith.index_cast %arg16 : i32 to index
      %c0_14 = arith.constant 0 : index
      %c0_15 = arith.constant 0 : index
      %14 = vector.load %arg6[%13, %c0_14, %c0_15] : memref<2x1x32xf32, #tpu.memory_space<vmem>>, vector<1x1x32xf32>
      %15 = vector.shape_cast %14 : vector<1x1x32xf32> to vector<1x32xf32>
      %cst = arith.constant dense<0.000000e+00> : vector<8xf32>
      %16 = vector.multi_reduction <add>, %arg17, %cst [1] : vector<8x32xf32> to vector<8xf32>
      %17 = vector.shape_cast %16 : vector<8xf32> to vector<8x1xf32>
      %cst_16 = arith.constant 3.200000e+01 : f32
      %18 = vector.broadcast %cst_16 : f32 to vector<8x1xf32>
      %19 = arith.divf %17, %18 : vector<8x1xf32>
      %20 = vector.broadcast %19 : vector<8x1xf32> to vector<8x32xf32>
      %21 = arith.subf %arg17, %20 : vector<8x32xf32>
      %22 = arith.mulf %21, %21 : vector<8x32xf32>
      %cst_17 = arith.constant dense<0.000000e+00> : vector<8xf32>
      %23 = vector.multi_reduction <add>, %22, %cst_17 [1] : vector<8x32xf32> to vector<8xf32>
      %24 = vector.shape_cast %23 : vector<8xf32> to vector<8x1xf32>
      %cst_18 = arith.constant 3.200000e+01 : f32
      %25 = vector.broadcast %cst_18 : f32 to vector<8x1xf32>
      %26 = arith.divf %24, %25 : vector<8x1xf32>
      %cst_19 = arith.constant 9.99999974E-6 : f32
      %27 = vector.broadcast %cst_19 : f32 to vector<8x1xf32>
      %28 = arith.addf %26, %27 : vector<8x1xf32>
      %29 = math.rsqrt %28 : vector<8x1xf32>
      %30 = vector.broadcast %29 : vector<8x1xf32> to vector<8x32xf32>
      %31 = arith.mulf %21, %30 : vector<8x32xf32>
      %32 = vector.broadcast %12 : vector<1x32xf32> to vector<8x32xf32>
      %33 = arith.mulf %31, %32 : vector<8x32xf32>
      %34 = vector.broadcast %15 : vector<1x32xf32> to vector<8x32xf32>
      %35 = arith.addf %33, %34 : vector<8x32xf32>
      %cst_20 = arith.constant dense<0.000000e+00> : vector<8x32xf32>
      %36 = tpu.matmul %35, %1, %cst_20 {dimension_numbers = #tpu.dot_dimension_numbers<[1], [0], [0], [1], [0, 0, 1, 1], [], []>} : vector<8x32xf32>, vector<32x32xf32>, vector<8x32xf32> -> vector<8x32xf32>
      %37 = arith.mulf %36, %0 : vector<8x32xf32>
      %cst_21 = arith.constant dense<0.000000e+00> : vector<32xf32>
      %38 = vector.multi_reduction <add>, %37, %cst_21 [0] : vector<8x32xf32> to vector<32xf32>
      %39 = vector.shape_cast %38 : vector<32xf32> to vector<1x32xf32>
      %40 = arith.index_cast %arg16 : i32 to index
      %c0_22 = arith.constant 0 : index
      %c0_23 = arith.constant 0 : index
      %41 = vector.load %arg7[%40, %c0_22, %c0_23] : memref<2x32x64xf32, #tpu.memory_space<vmem>>, vector<1x32x64xf32>
      %42 = vector.shape_cast %41 : vector<1x32x64xf32> to vector<32x64xf32>
      %cst_24 = arith.constant dense<0.000000e+00> : vector<1x64xf32>
      %43 = tpu.matmul %39, %42, %cst_24 {dimension_numbers = #tpu.dot_dimension_numbers<[1], [0], [0], [1], [0, 0, 1, 1], [], []>} : vector<1x32xf32>, vector<32x64xf32>, vector<1x64xf32> -> vector<1x64xf32>
      %44 = arith.index_cast %arg16 : i32 to index
      %c0_25 = arith.constant 0 : index
      %c0_26 = arith.constant 0 : index
      %45 = vector.load %arg8[%44, %c0_25, %c0_26] : memref<2x1x64xf32, #tpu.memory_space<vmem>>, vector<1x1x64xf32>
      %46 = vector.shape_cast %45 : vector<1x1x64xf32> to vector<1x64xf32>
      %47 = arith.addf %43, %46 : vector<1x64xf32>
      %cst_27 = arith.constant 5.000000e-01 : f32
      %48 = vector.broadcast %cst_27 : f32 to vector<1x64xf32>
      %49 = arith.mulf %48, %47 : vector<1x64xf32>
      %cst_28 = arith.constant 0.707106769 : f32
      %50 = vector.broadcast %cst_28 : f32 to vector<1x64xf32>
      %51 = arith.mulf %47, %50 : vector<1x64xf32>
      %52 = math.erf %51 : vector<1x64xf32>
      %cst_29 = arith.constant 1.000000e+00 : f32
      %53 = vector.broadcast %cst_29 : f32 to vector<1x64xf32>
      %54 = arith.addf %53, %52 : vector<1x64xf32>
      %55 = arith.mulf %49, %54 : vector<1x64xf32>
      %56 = arith.index_cast %arg16 : i32 to index
      %c0_30 = arith.constant 0 : index
      %c0_31 = arith.constant 0 : index
      %57 = vector.load %arg9[%56, %c0_30, %c0_31] : memref<2x64x32xf32, #tpu.memory_space<vmem>>, vector<1x64x32xf32>
      %58 = vector.shape_cast %57 : vector<1x64x32xf32> to vector<64x32xf32>
      %cst_32 = arith.constant dense<0.000000e+00> : vector<1x32xf32>
      %59 = tpu.matmul %55, %58, %cst_32 {dimension_numbers = #tpu.dot_dimension_numbers<[1], [0], [0], [1], [0, 0, 1, 1], [], []>} : vector<1x64xf32>, vector<64x32xf32>, vector<1x32xf32> -> vector<1x32xf32>
      %60 = arith.index_cast %arg16 : i32 to index
      %c0_33 = arith.constant 0 : index
      %c0_34 = arith.constant 0 : index
      %61 = vector.load %arg10[%60, %c0_33, %c0_34] : memref<2x1x32xf32, #tpu.memory_space<vmem>>, vector<1x1x32xf32>
      %62 = vector.shape_cast %61 : vector<1x1x32xf32> to vector<1x32xf32>
      %63 = arith.addf %59, %62 : vector<1x32xf32>
      %64 = vector.broadcast %63 : vector<1x32xf32> to vector<8x32xf32>
      %65 = arith.mulf %0, %64 : vector<8x32xf32>
      %cst_35 = arith.constant dense<0.000000e+00> : vector<8x32xf32>
      %66 = tpu.matmul %65, %2, %cst_35 {dimension_numbers = #tpu.dot_dimension_numbers<[1], [0], [0], [1], [0, 0, 1, 1], [], []>} : vector<8x32xf32>, vector<32x32xf32>, vector<8x32xf32> -> vector<8x32xf32>
      %67 = arith.addf %66, %arg17 : vector<8x32xf32>
      %cst_36 = arith.constant dense<0.000000e+00> : vector<8xf32>
      %68 = vector.multi_reduction <add>, %67, %cst_36 [1] : vector<8x32xf32> to vector<8xf32>
      %69 = vector.shape_cast %68 : vector<8xf32> to vector<8x1xf32>
      %cst_37 = arith.constant 3.200000e+01 : f32
      %70 = vector.broadcast %cst_37 : f32 to vector<8x1xf32>
      %71 = arith.divf %69, %70 : vector<8x1xf32>
      %72 = vector.broadcast %71 : vector<8x1xf32> to vector<8x32xf32>
      %73 = arith.subf %67, %72 : vector<8x32xf32>
      %74 = arith.mulf %73, %73 : vector<8x32xf32>
      %cst_38 = arith.constant dense<0.000000e+00> : vector<8xf32>
      %75 = vector.multi_reduction <add>, %74, %cst_38 [1] : vector<8x32xf32> to vector<8xf32>
      %76 = vector.shape_cast %75 : vector<8xf32> to vector<8x1xf32>
      %cst_39 = arith.constant 3.200000e+01 : f32
      %77 = vector.broadcast %cst_39 : f32 to vector<8x1xf32>
      %78 = arith.divf %76, %77 : vector<8x1xf32>
      %cst_40 = arith.constant 9.99999974E-6 : f32
      %79 = vector.broadcast %cst_40 : f32 to vector<8x1xf32>
      %80 = arith.addf %78, %79 : vector<8x1xf32>
      %81 = math.rsqrt %80 : vector<8x1xf32>
      %82 = vector.broadcast %81 : vector<8x1xf32> to vector<8x32xf32>
      %83 = arith.mulf %73, %82 : vector<8x32xf32>
      %84 = vector.broadcast %12 : vector<1x32xf32> to vector<8x32xf32>
      %85 = arith.mulf %83, %84 : vector<8x32xf32>
      %86 = vector.broadcast %15 : vector<1x32xf32> to vector<8x32xf32>
      %87 = arith.addf %85, %86 : vector<8x32xf32>
      %88 = arith.index_cast %arg16 : i32 to index
      %c0_41 = arith.constant 0 : index
      %c0_42 = arith.constant 0 : index
      %89 = vector.load %arg11[%88, %c0_41, %c0_42] : memref<2x32x64xf32, #tpu.memory_space<vmem>>, vector<1x32x64xf32>
      %90 = vector.shape_cast %89 : vector<1x32x64xf32> to vector<32x64xf32>
      %cst_43 = arith.constant dense<0.000000e+00> : vector<8x64xf32>
      %91 = tpu.matmul %87, %90, %cst_43 {dimension_numbers = #tpu.dot_dimension_numbers<[1], [0], [0], [1], [0, 0, 1, 1], [], []>} : vector<8x32xf32>, vector<32x64xf32>, vector<8x64xf32> -> vector<8x64xf32>
      %92 = arith.index_cast %arg16 : i32 to index
      %c0_44 = arith.constant 0 : index
      %c0_45 = arith.constant 0 : index
      %93 = vector.load %arg12[%92, %c0_44, %c0_45] : memref<2x1x64xf32, #tpu.memory_space<vmem>>, vector<1x1x64xf32>
      %94 = vector.shape_cast %93 : vector<1x1x64xf32> to vector<1x64xf32>
      %95 = vector.broadcast %94 : vector<1x64xf32> to vector<8x64xf32>
      %96 = arith.addf %91, %95 : vector<8x64xf32>
      %cst_46 = arith.constant 5.000000e-01 : f32
      %97 = vector.broadcast %cst_46 : f32 to vector<8x64xf32>
      %98 = arith.mulf %97, %96 : vector<8x64xf32>
      %cst_47 = arith.constant 0.707106769 : f32
      %99 = vector.broadcast %cst_47 : f32 to vector<8x64xf32>
      %100 = arith.mulf %96, %99 : vector<8x64xf32>
      %101 = math.erf %100 : vector<8x64xf32>
      %cst_48 = arith.constant 1.000000e+00 : f32
      %102 = vector.broadcast %cst_48 : f32 to vector<8x64xf32>
      %103 = arith.addf %102, %101 : vector<8x64xf32>
      %104 = arith.mulf %98, %103 : vector<8x64xf32>
      %105 = arith.index_cast %arg16 : i32 to index
      %c0_49 = arith.constant 0 : index
      %c0_50 = arith.constant 0 : index
      %106 = vector.load %arg13[%105, %c0_49, %c0_50] : memref<2x64x32xf32, #tpu.memory_space<vmem>>, vector<1x64x32xf32>
      %107 = vector.shape_cast %106 : vector<1x64x32xf32> to vector<64x32xf32>
      %cst_51 = arith.constant dense<0.000000e+00> : vector<8x32xf32>
      %108 = tpu.matmul %104, %107, %cst_51 {dimension_numbers = #tpu.dot_dimension_numbers<[1], [0], [0], [1], [0, 0, 1, 1], [], []>} : vector<8x64xf32>, vector<64x32xf32>, vector<8x32xf32> -> vector<8x32xf32>
      %109 = arith.index_cast %arg16 : i32 to index
      %c0_52 = arith.constant 0 : index
      %c0_53 = arith.constant 0 : index
      %110 = vector.load %arg14[%109, %c0_52, %c0_53] : memref<2x1x32xf32, #tpu.memory_space<vmem>>, vector<1x1x32xf32>
      %111 = vector.shape_cast %110 : vector<1x1x32xf32> to vector<1x32xf32>
      %112 = vector.broadcast %111 : vector<1x32xf32> to vector<8x32xf32>
      %113 = arith.addf %108, %112 : vector<8x32xf32>
      %114 = arith.addf %113, %67 : vector<8x32xf32>
      scf.yield %114 : vector<8x32xf32>
    }
    %c2_i32_8 = arith.constant 2 : i32
    %c0_9 = arith.constant 0 : index
    %c0_10 = arith.constant 0 : index
    %c0_11 = arith.constant 0 : index
    %7 = vector.load %arg15[%c0_9, %c0_10, %c0_11] : memref<1x8x32xf32, #tpu.memory_space<vmem>>, vector<1x8x32xf32>
    %8 = vector.shape_cast %7 : vector<1x8x32xf32> to vector<8x32xf32>
    %9 = vector.shape_cast %6 : vector<8x32xf32> to vector<1x8x32xf32>
    tpu.vector_store %arg15[%c0_9, %c0_10, %c0_11], %9 {strides = array<i32>} : memref<1x8x32xf32, #tpu.memory_space<vmem>>, vector<1x8x32xf32>,
    return
  }
  func.func @transform_0(%arg0: i32) -> (i32, i32, i32) {
    %c0_i32 = arith.constant 0 : i32
    %c0_i32_0 = arith.constant 0 : i32
    %c0_i32_1 = arith.constant 0 : i32
    return %arg0, %c0_i32, %c0_i32_0 : i32, i32, i32
  }
  func.func @transform_1(%arg0: i32) -> (i32, i32) {
    %c0_i32 = arith.constant 0 : i32
    %c0_i32_0 = arith.constant 0 : i32
    %c0_i32_1 = arith.constant 0 : i32
    return %c0_i32, %c0_i32_0 : i32, i32
  }
  func.func @transform_2(%arg0: i32) -> (i32, i32) {
    %c0_i32 = arith.constant 0 : i32
    %c0_i32_0 = arith.constant 0 : i32
    %c0_i32_1 = arith.constant 0 : i32
    return %c0_i32, %c0_i32_0 : i32, i32
  }
  func.func @transform_3(%arg0: i32) -> (i32, i32) {
    %c0_i32 = arith.constant 0 : i32
    %c0_i32_0 = arith.constant 0 : i32
    %c0_i32_1 = arith.constant 0 : i32
    return %c0_i32, %c0_i32_0 : i32, i32
  }
  func.func @transform_4(%arg0: i32) -> (i32, i32, i32) {
    %c0_i32 = arith.constant 0 : i32
    %c0_i32_0 = arith.constant 0 : i32
    %c0_i32_1 = arith.constant 0 : i32
    %c0_i32_2 = arith.constant 0 : i32
    return %c0_i32, %c0_i32_0, %c0_i32_1 : i32, i32, i32
  }
  func.func @transform_5(%arg0: i32) -> (i32, i32, i32) {
    %c0_i32 = arith.constant 0 : i32
    %c0_i32_0 = arith.constant 0 : i32
    %c0_i32_1 = arith.constant 0 : i32
    %c0_i32_2 = arith.constant 0 : i32
    return %c0_i32, %c0_i32_0, %c0_i32_1 : i32, i32, i32
  }
  func.func @transform_6(%arg0: i32) -> (i32, i32, i32) {
    %c0_i32 = arith.constant 0 : i32
    %c0_i32_0 = arith.constant 0 : i32
    %c0_i32_1 = arith.constant 0 : i32
    %c0_i32_2 = arith.constant 0 : i32
    return %c0_i32, %c0_i32_0, %c0_i32_1 : i32, i32, i32
  }
  func.func @transform_7(%arg0: i32) -> (i32, i32, i32) {
    %c0_i32 = arith.constant 0 : i32
    %c0_i32_0 = arith.constant 0 : i32
    %c0_i32_1 = arith.constant 0 : i32
    %c0_i32_2 = arith.constant 0 : i32
    return %c0_i32, %c0_i32_0, %c0_i32_1 : i32, i32, i32
  }
  func.func @transform_8(%arg0: i32) -> (i32, i32, i32) {
    %c0_i32 = arith.constant 0 : i32
    %c0_i32_0 = arith.constant 0 : i32
    %c0_i32_1 = arith.constant 0 : i32
    %c0_i32_2 = arith.constant 0 : i32
    return %c0_i32, %c0_i32_0, %c0_i32_1 : i32, i32, i32
  }
  func.func @transform_9(%arg0: i32) -> (i32, i32, i32) {
    %c0_i32 = arith.constant 0 : i32
    %c0_i32_0 = arith.constant 0 : i32
    %c0_i32_1 = arith.constant 0 : i32
    %c0_i32_2 = arith.constant 0 : i32
    return %c0_i32, %c0_i32_0, %c0_i32_1 : i32, i32, i32
  }
  func.func @transform_10(%arg0: i32) -> (i32, i32, i32) {
    %c0_i32 = arith.constant 0 : i32
    %c0_i32_0 = arith.constant 0 : i32
    %c0_i32_1 = arith.constant 0 : i32
    %c0_i32_2 = arith.constant 0 : i32
    return %c0_i32, %c0_i32_0, %c0_i32_1 : i32, i32, i32
  }
  func.func @transform_11(%arg0: i32) -> (i32, i32, i32) {
    %c0_i32 = arith.constant 0 : i32
    %c0_i32_0 = arith.constant 0 : i32
    %c0_i32_1 = arith.constant 0 : i32
    %c0_i32_2 = arith.constant 0 : i32
    return %c0_i32, %c0_i32_0, %c0_i32_1 : i32, i32, i32
  }
  func.func @transform_12(%arg0: i32) -> (i32, i32, i32) {
    %c0_i32 = arith.constant 0 : i32
    %c0_i32_0 = arith.constant 0 : i32
    %c0_i32_1 = arith.constant 0 : i32
    %c0_i32_2 = arith.constant 0 : i32
    return %c0_i32, %c0_i32_0, %c0_i32_1 : i32, i32, i32
  }
  func.func @transform_13(%arg0: i32) -> (i32, i32, i32) {
    %c0_i32 = arith.constant 0 : i32
    %c0_i32_0 = arith.constant 0 : i32
    %c0_i32_1 = arith.constant 0 : i32
    %c0_i32_2 = arith.constant 0 : i32
    return %c0_i32, %c0_i32_0, %c0_i32_1 : i32, i32, i32
  }
  func.func @transform_14(%arg0: i32) -> (i32, i32, i32) {
    %c0_i32 = arith.constant 0 : i32
    %c0_i32_0 = arith.constant 0 : i32
    %c0_i32_1 = arith.constant 0 : i32
    return %arg0, %c0_i32, %c0_i32_0 : i32, i32, i32
  }
}

</mosaic_0001>

<llo_original>
// kernel: contextualizer_forward.1
$region0: #{contextualizer_forward.1}
  #allocation0 [shape = 'u32[]', space=smem, size = 0x4, offset = 0x4, fixed_abs, tag = 'smem constant byte address 0x4 - core index']
  #allocation1 [shape = 'u32[144,128]{1,0:T(1,128)}', space=vmem, size = 0x12000, scoped, tag = 'internal scratch']
  %s0 = inlined_call_operand.vmem [shape: f32[2,8,32], index: 0, kind: input, shape index: {}]
  %s1 = inlined_call_operand.vmem [shape: f32[8,32], index: 1, kind: input, shape index: {}]
  %s2 = inlined_call_operand.vmem [shape: f32[32,32], index: 2, kind: input, shape index: {}]
  %s3 = inlined_call_operand.vmem [shape: f32[32,32], index: 3, kind: input, shape index: {}]
  %s4 = inlined_call_operand.vmem [shape: f32[2,1,32], index: 4, kind: input, shape index: {}]
  %s5 = inlined_call_operand.vmem [shape: f32[2,1,32], index: 5, kind: input, shape index: {}]
  %s6 = inlined_call_operand.vmem [shape: f32[2,32,64], index: 6, kind: input, shape index: {}]
  %s7 = inlined_call_operand.vmem [shape: f32[2,1,64], index: 7, kind: input, shape index: {}]
  %s8 = inlined_call_operand.vmem [shape: f32[2,64,32], index: 8, kind: input, shape index: {}]
  %s9 = inlined_call_operand.vmem [shape: f32[2,1,32], index: 9, kind: input, shape index: {}]
  %s10 = inlined_call_operand.vmem [shape: f32[2,32,64], index: 10, kind: input, shape index: {}]
  %s11 = inlined_call_operand.vmem [shape: f32[2,1,64], index: 11, kind: input, shape index: {}]
  %s12 = inlined_call_operand.vmem [shape: f32[2,64,32], index: 12, kind: input, shape index: {}]
  %s13 = inlined_call_operand.vmem [shape: f32[2,1,32], index: 13, kind: input, shape index: {}]
  %s14 = inlined_call_operand.hbm [shape: f32[2,8,32], index: 14, kind: output, shape index: {}]
  %s15 = sld [smem:[#allocation0]]
  $region96: #{contextualizer_forward.1} parent=0
    _
  %s17 = ssub.s32 1, %s15
  %s18 = scalar_select 0, %s17, %s15
  $region1: #{contextualizer_forward.1} parent=0
    #allocation2 [shape = 'u8[8192]{0}', space=vmem, size = 0x2000, scoped, tag = 'output window, operand 0']
    #allocation3 [shape = 's32[2]{0}', space=sflag, size = 0x8, scoped, tag = 'scoped memory for contextualizer_forward.1']
    %19 = vsyncpa [#allocation3], 0
    %s20 = scalar_lea.sflag [#allocation3], 1
    %21 = vsyncpa %s20, 0
    loop: start=0, step=1, limit=4
    $region2: #{contextualizer_forward.1} parent=1 // loop_pre_header
      _
    $region3: #{contextualizer_forward.1} parent=1 // loop_header
      %s23 = sphi 0, %s27
      %p24 = scmp.ge.s32.totalorder %s23, 4
      %s33 = sphi 0, %s35
      %s36 = sphi 0, %s33
      %s37 = sphi 0, %s36
      %s53 = sphi 0, %s37
      %s57 = sphi 0, %s57
      %s59 = sphi 0, %s57
      %s60 = sphi 0, %s59
      %s74 = sphi 0, %s60
      %s78 = sphi 0, %s78
      %s80 = sphi 0, %s78
      %s81 = sphi 0, %s80
      %s95 = sphi 0, %s81
      %s99 = sphi 0, %s99
      %s101 = sphi 0, %s99
      %s102 = sphi 0, %s101
      %s116 = sphi 0, %s102
      %s120 = sphi 0, %s120
      %s122 = sphi 0, %s120
      %s123 = sphi 0, %s122
      %s137 = sphi 0, %s123
      %s141 = sphi 0, %s141
      %s143 = sphi 0, %s141
      %s144 = sphi 0, %s143
      %s158 = sphi 0, %s144
      %s162 = sphi 0, %s162
      %s164 = sphi 0, %s162
      %s165 = sphi 0, %s164
      %s179 = sphi 0, %s165
      %s183 = sphi 0, %s183
      %s185 = sphi 0, %s183
      %s186 = sphi 0, %s185
      %s200 = sphi 0, %s186
      %s204 = sphi 0, %s204
      %s206 = sphi 0, %s204
      %s207 = sphi 0, %s206
      %s221 = sphi 0, %s207
      %s225 = sphi 0, %s225
      %s227 = sphi 0, %s225
      %s228 = sphi 0, %s227
      %s242 = sphi 0, %s228
      %s246 = sphi 0, %s246
      %s248 = sphi 0, %s246
      %s249 = sphi 0, %s248
      %s263 = sphi 0, %s249
      %s267 = sphi 0, %s267
      %s269 = sphi 0, %s267
      %s270 = sphi 0, %s269
      %s284 = sphi 0, %s270
      %s288 = sphi 0, %s288
      %s290 = sphi 0, %s288
      %s291 = sphi 0, %s290
      %s305 = sphi 0, %s291
      %s309 = sphi 0, %s309
      %s311 = sphi 0, %s309
      %s312 = sphi 0, %s311
      %s326 = sphi 0, %s312
      %s332 = sphi 0, %s334
      %s335 = sphi 0, %s332
      %s336 = sphi 0, %s335
      %s352 = sphi 0, %s336
    $region4: #{contextualizer_forward.1} parent=1 // loop_header_branch
      %26 = sbr.rel (%p24) target = $region8
    $region5: #{contextualizer_forward.1} parent=1 // loop_body
      %s28 = ssub.s32 %s23, 1
      %s29 = ssub.s32 %s23, 2
      %s30 = sadd.s32 %s23, 1
      %s31 = ssub.s32 %s23, %s30
      %p32 = scmp.eq.s32.totalorder %s31, 0
      %s34 = sadd.s32 %s33, 1
      %s35 = scalar_select %p32, %s33, %s34
      %p38 = pneg %p32
      %p39 = scmp.eq.s32.totalorder %s23, 1
      %p40 = por %p38, %p39
      %p41 = scmp.ne.s32.totalorder %s33, %s36
      %p42 = scmp.eq.s32.totalorder %s23, 0
      %p43 = por %p41, %p42
      %p44 = scmp.ne.s32.totalorder %s33, %s36
      %p45 = scmp.eq.s32.totalorder %s28, 1
      %p46 = por %p44, %p45
      %p47 = scmp.ne.s32.totalorder %s36, %s37
      %p48 = scmp.eq.s32.totalorder %s28, 0
      %p49 = por %p47, %p48
      %p50 = scmp.ne.s32.totalorder %s36, %s37
      %p51 = scmp.eq.s32.totalorder %s29, 1
      %p52 = por %p50, %p51
      %p54 = scmp.ne.s32.totalorder %s37, %s53
      %p55 = scmp.eq.s32.totalorder %s29, 0
      %p56 = por %p54, %p55
      %s58 = sadd.s32 %s57, 1
      %p61 = scmp.eq.s32.totalorder %s23, 1
      %p62 = scmp.ne.s32.totalorder %s57, %s59
      %p63 = scmp.eq.s32.totalorder %s23, 0
      %p64 = por %p62, %p63
      %p65 = scmp.ne.s32.totalorder %s57, %s59
      %p66 = scmp.eq.s32.totalorder %s28, 1
      %p67 = por %p65, %p66
      %p68 = scmp.ne.s32.totalorder %s59, %s60
      %p69 = scmp.eq.s32.totalorder %s28, 0
      %p70 = por %p68, %p69
      %p71 = scmp.ne.s32.totalorder %s59, %s60
      %p72 = scmp.eq.s32.totalorder %s29, 1
      %p73 = por %p71, %p72
      %p75 = scmp.ne.s32.totalorder %s60, %s74
      %p76 = scmp.eq.s32.totalorder %s29, 0
      %p77 = por %p75, %p76
      %s79 = sadd.s32 %s78, 1
      %p82 = scmp.eq.s32.totalorder %s23, 1
      %p83 = scmp.ne.s32.totalorder %s78, %s80
      %p84 = scmp.eq.s32.totalorder %s23, 0
      %p85 = por %p83, %p84
      %p86 = scmp.ne.s32.totalorder %s78, %s80
      %p87 = scmp.eq.s32.totalorder %s28, 1
      %p88 = por %p86, %p87
      %p89 = scmp.ne.s32.totalorder %s80, %s81
      %p90 = scmp.eq.s32.totalorder %s28, 0
      %p91 = por %p89, %p90
      %p92 = scmp.ne.s32.totalorder %s80, %s81
      %p93 = scmp.eq.s32.totalorder %s29, 1
      %p94 = por %p92, %p93
      %p96 = scmp.ne.s32.totalorder %s81, %s95
      %p97 = scmp.eq.s32.totalorder %s29, 0
      %p98 = por %p96, %p97
      %s100 = sadd.s32 %s99, 1
      %p103 = scmp.eq.s32.totalorder %s23, 1
      %p104 = scmp.ne.s32.totalorder %s99, %s101
      %p105 = scmp.eq.s32.totalorder %s23, 0
      %p106 = por %p104, %p105
      %p107 = scmp.ne.s32.totalorder %s99, %s101
      %p108 = scmp.eq.s32.totalorder %s28, 1
      %p109 = por %p107, %p108
      %p110 = scmp.ne.s32.totalorder %s101, %s102
      %p111 = scmp.eq.s32.totalorder %s28, 0
      %p112 = por %p110, %p111
      %p113 = scmp.ne.s32.totalorder %s101, %s102
      %p114 = scmp.eq.s32.totalorder %s29, 1
      %p115 = por %p113, %p114
      %p117 = scmp.ne.s32.totalorder %s102, %s116
      %p118 = scmp.eq.s32.totalorder %s29, 0
      %p119 = por %p117, %p118
      %s121 = sadd.s32 %s120, 1
      %p124 = scmp.eq.s32.totalorder %s23, 1
      %p125 = scmp.ne.s32.totalorder %s120, %s122
      %p126 = scmp.eq.s32.totalorder %s23, 0
      %p127 = por %p125, %p126
      %p128 = scmp.ne.s32.totalorder %s120, %s122
      %p129 = scmp.eq.s32.totalorder %s28, 1
      %p130 = por %p128, %p129
      %p131 = scmp.ne.s32.totalorder %s122, %s123
      %p132 = scmp.eq.s32.totalorder %s28, 0
      %p133 = por %p131, %p132
      %p134 = scmp.ne.s32.totalorder %s122, %s123
      %p135 = scmp.eq.s32.totalorder %s29, 1
      %p136 = por %p134, %p135
      %p138 = scmp.ne.s32.totalorder %s123, %s137
      %p139 = scmp.eq.s32.totalorder %s29, 0
      %p140 = por %p138, %p139
      %s142 = sadd.s32 %s141, 1
      %p145 = scmp.eq.s32.totalorder %s23, 1
      %p146 = scmp.ne.s32.totalorder %s141, %s143
      %p147 = scmp.eq.s32.totalorder %s23, 0
      %p148 = por %p146, %p147
      %p149 = scmp.ne.s32.totalorder %s141, %s143
      %p150 = scmp.eq.s32.totalorder %s28, 1
      %p151 = por %p149, %p150
      %p152 = scmp.ne.s32.totalorder %s143, %s144
      %p153 = scmp.eq.s32.totalorder %s28, 0
      %p154 = por %p152, %p153
      %p155 = scmp.ne.s32.totalorder %s143, %s144
      %p156 = scmp.eq.s32.totalorder %s29, 1
      %p157 = por %p155, %p156
      %p159 = scmp.ne.s32.totalorder %s144, %s158
      %p160 = scmp.eq.s32.totalorder %s29, 0
      %p161 = por %p159, %p160
      %s163 = sadd.s32 %s162, 1
      %p166 = scmp.eq.s32.totalorder %s23, 1
      %p167 = scmp.ne.s32.totalorder %s162, %s164
      %p168 = scmp.eq.s32.totalorder %s23, 0
      %p169 = por %p167, %p168
      %p170 = scmp.ne.s32.totalorder %s162, %s164
      %p171 = scmp.eq.s32.totalorder %s28, 1
      %p172 = por %p170, %p171
      %p173 = scmp.ne.s32.totalorder %s164, %s165
      %p174 = scmp.eq.s32.totalorder %s28, 0
      %p175 = por %p173, %p174
      %p176 = scmp.ne.s32.totalorder %s164, %s165
      %p177 = scmp.eq.s32.totalorder %s29, 1
      %p178 = por %p176, %p177
      %p180 = scmp.ne.s32.totalorder %s165, %s179
      %p181 = scmp.eq.s32.totalorder %s29, 0
      %p182 = por %p180, %p181
      %s184 = sadd.s32 %s183, 1
      %p187 = scmp.eq.s32.totalorder %s23, 1
      %p188 = scmp.ne.s32.totalorder %s183, %s185
      %p189 = scmp.eq.s32.totalorder %s23, 0
      %p190 = por %p188, %p189
      %p191 = scmp.ne.s32.totalorder %s183, %s185
      %p192 = scmp.eq.s32.totalorder %s28, 1
      %p193 = por %p191, %p192
      %p194 = scmp.ne.s32.totalorder %s185, %s186
      %p195 = scmp.eq.s32.totalorder %s28, 0
      %p196 = por %p194, %p195
      %p197 = scmp.ne.s32.totalorder %s185, %s186
      %p198 = scmp.eq.s32.totalorder %s29, 1
      %p199 = por %p197, %p198
      %p201 = scmp.ne.s32.totalorder %s186, %s200
      %p202 = scmp.eq.s32.totalorder %s29, 0
      %p203 = por %p201, %p202
      %s205 = sadd.s32 %s204, 1
      %p208 = scmp.eq.s32.totalorder %s23, 1
      %p209 = scmp.ne.s32.totalorder %s204, %s206
      %p210 = scmp.eq.s32.totalorder %s23, 0
      %p211 = por %p209, %p210
      %p212 = scmp.ne.s32.totalorder %s204, %s206
      %p213 = scmp.eq.s32.totalorder %s28, 1
      %p214 = por %p212, %p213
      %p215 = scmp.ne.s32.totalorder %s206, %s207
      %p216 = scmp.eq.s32.totalorder %s28, 0
      %p217 = por %p215, %p216
      %p218 = scmp.ne.s32.totalorder %s206, %s207
      %p219 = scmp.eq.s32.totalorder %s29, 1
      %p220 = por %p218, %p219
      %p222 = scmp.ne.s32.totalorder %s207, %s221
      %p223 = scmp.eq.s32.totalorder %s29, 0
      %p224 = por %p222, %p223
      %s226 = sadd.s32 %s225, 1
      %p229 = scmp.eq.s32.totalorder %s23, 1
      %p230 = scmp.ne.s32.totalorder %s225, %s227
      %p231 = scmp.eq.s32.totalorder %s23, 0
      %p232 = por %p230, %p231
      %p233 = scmp.ne.s32.totalorder %s225, %s227
      %p234 = scmp.eq.s32.totalorder %s28, 1
      %p235 = por %p233, %p234
      %p236 = scmp.ne.s32.totalorder %s227, %s228
      %p237 = scmp.eq.s32.totalorder %s28, 0
      %p238 = por %p236, %p237
      %p239 = scmp.ne.s32.totalorder %s227, %s228
      %p240 = scmp.eq.s32.totalorder %s29, 1
      %p241 = por %p239, %p240
      %p243 = scmp.ne.s32.totalorder %s228, %s242
      %p244 = scmp.eq.s32.totalorder %s29, 0
      %p245 = por %p243, %p244
      %s247 = sadd.s32 %s246, 1
      %p250 = scmp.eq.s32.totalorder %s23, 1
      %p251 = scmp.ne.s32.totalorder %s246, %s248
      %p252 = scmp.eq.s32.totalorder %s23, 0
      %p253 = por %p251, %p252
      %p254 = scmp.ne.s32.totalorder %s246, %s248
      %p255 = scmp.eq.s32.totalorder %s28, 1
      %p256 = por %p254, %p255
      %p257 = scmp.ne.s32.totalorder %s248, %s249
      %p258 = scmp.eq.s32.totalorder %s28, 0
      %p259 = por %p257, %p258
      %p260 = scmp.ne.s32.totalorder %s248, %s249
      %p261 = scmp.eq.s32.totalorder %s29, 1
      %p262 = por %p260, %p261
      %p264 = scmp.ne.s32.totalorder %s249, %s263
      %p265 = scmp.eq.s32.totalorder %s29, 0
      %p266 = por %p264, %p265
      %s268 = sadd.s32 %s267, 1
      %p271 = scmp.eq.s32.totalorder %s23, 1
      %p272 = scmp.ne.s32.totalorder %s267, %s269
      %p273 = scmp.eq.s32.totalorder %s23, 0
      %p274 = por %p272, %p273
      %p275 = scmp.ne.s32.totalorder %s267, %s269
      %p276 = scmp.eq.s32.totalorder %s28, 1
      %p277 = por %p275, %p276
      %p278 = scmp.ne.s32.totalorder %s269, %s270
      %p279 = scmp.eq.s32.totalorder %s28, 0
      %p280 = por %p278, %p279
      %p281 = scmp.ne.s32.totalorder %s269, %s270
      %p282 = scmp.eq.s32.totalorder %s29, 1
      %p283 = por %p281, %p282
      %p285 = scmp.ne.s32.totalorder %s270, %s284
      %p286 = scmp.eq.s32.totalorder %s29, 0
      %p287 = por %p285, %p286
      %s289 = sadd.s32 %s288, 1
      %p292 = scmp.eq.s32.totalorder %s23, 1
      %p293 = scmp.ne.s32.totalorder %s288, %s290
      %p294 = scmp.eq.s32.totalorder %s23, 0
      %p295 = por %p293, %p294
      %p296 = scmp.ne.s32.totalorder %s288, %s290
      %p297 = scmp.eq.s32.totalorder %s28, 1
      %p298 = por %p296, %p297
      %p299 = scmp.ne.s32.totalorder %s290, %s291
      %p300 = scmp.eq.s32.totalorder %s28, 0
      %p301 = por %p299, %p300
      %p302 = scmp.ne.s32.totalorder %s290, %s291
      %p303 = scmp.eq.s32.totalorder %s29, 1
      %p304 = por %p302, %p303
      %p306 = scmp.ne.s32.totalorder %s291, %s305
      %p307 = scmp.eq.s32.totalorder %s29, 0
      %p308 = por %p306, %p307
      %s310 = sadd.s32 %s309, 1
      %p313 = scmp.eq.s32.totalorder %s23, 1
      %p314 = scmp.ne.s32.totalorder %s309, %s311
      %p315 = scmp.eq.s32.totalorder %s23, 0
      %p316 = por %p314, %p315
      %p317 = scmp.ne.s32.totalorder %s309, %s311
      %p318 = scmp.eq.s32.totalorder %s28, 1
      %p319 = por %p317, %p318
      %p320 = scmp.ne.s32.totalorder %s311, %s312
      %p321 = scmp.eq.s32.totalorder %s28, 0
      %p322 = por %p320, %p321
      %p323 = scmp.ne.s32.totalorder %s311, %s312
      %p324 = scmp.eq.s32.totalorder %s29, 1
      %p325 = por %p323, %p324
      %p327 = scmp.ne.s32.totalorder %s312, %s326
      %p328 = scmp.eq.s32.totalorder %s29, 0
      %p329 = por %p327, %p328
      %s330 = ssub.s32 %s23, %s30
      %p331 = scmp.eq.s32.totalorder %s330, 0
      %s333 = sadd.s32 %s332, 1
      %s334 = scalar_select %p331, %s332, %s333
      %p337 = pneg %p331
      %p338 = scmp.eq.s32.totalorder %s23, 1
      %p339 = por %p337, %p338
      %p340 = scmp.ne.s32.totalorder %s332, %s335
      %p341 = scmp.eq.s32.totalorder %s23, 0
      %p342 = por %p340, %p341
      %p343 = scmp.ne.s32.totalorder %s332, %s335
      %p344 = scmp.eq.s32.totalorder %s28, 1
      %p345 = por %p343, %p344
      %p346 = scmp.ne.s32.totalorder %s335, %s336
      %p347 = scmp.eq.s32.totalorder %s28, 0
      %p348 = por %p346, %p347
      %p349 = scmp.ne.s32.totalorder %s335, %s336
      %p350 = scmp.eq.s32.totalorder %s29, 1
      %p351 = por %p349, %p350
      %p353 = scmp.ne.s32.totalorder %s336, %s352
      %p354 = scmp.eq.s32.totalorder %s29, 0
      %p355 = por %p353, %p354
      %p356 = scmp.le.s32.totalorder 1, %s23
      %p357 = scmp.lt.s32.totalorder %s23, 3
      %p358 = pnand %p356, %p357
      %p359 = pneg %p358
      // Predicated region
      $region9: #{contextualizer_forward.1} parent=5 // pred_check
        _
      $region10: #{contextualizer_forward.1} parent=5 // pred_check_branch
        %361 = sbr.rel (%p358) target = $region12
      $region11: #{contextualizer_forward.1} parent=5 // pred_region
        %s362 = ssub.s32 %s23, 1
        // Predicated region
        $region13: #{contextualizer_forward.1} parent=11 // pred_check
          %p363 = pneg %p70
        $region14: #{contextualizer_forward.1} parent=11 // pred_check_branch
          %365 = sbr.rel (%p363) target = $region16
        $region15: #{contextualizer_forward.1} parent=11 // pred_region
          _
        $region16: #{contextualizer_forward.1} parent=11 // pred_fallthru
          _
        // Predicated region
        $region17: #{contextualizer_forward.1} parent=11 // pred_check
          %p366 = pneg %p91
        $region18: #{contextualizer_forward.1} parent=11 // pred_check_branch
          %368 = sbr.rel (%p366) target = $region20
        $region19: #{contextualizer_forward.1} parent=11 // pred_region
          _
        $region20: #{contextualizer_forward.1} parent=11 // pred_fallthru
          _
        // Predicated region
        $region21: #{contextualizer_forward.1} parent=11 // pred_check
          %p369 = pneg %p112
        $region22: #{contextualizer_forward.1} parent=11 // pred_check_branch
          %371 = sbr.rel (%p369) target = $region24
        $region23: #{contextualizer_forward.1} parent=11 // pred_region
          _
        $region24: #{contextualizer_forward.1} parent=11 // pred_fallthru
          _
        // Predicated region
        $region25: #{contextualizer_forward.1} parent=11 // pred_check
          %p372 = pneg %p133
        $region26: #{contextualizer_forward.1} parent=11 // pred_check_branch
          %374 = sbr.rel (%p372) target = $region28
        $region27: #{contextualizer_forward.1} parent=11 // pred_region
          _
        $region28: #{contextualizer_forward.1} parent=11 // pred_fallthru
          _
        // Predicated region
        $region29: #{contextualizer_forward.1} parent=11 // pred_check
          %p375 = pneg %p154
        $region30: #{contextualizer_forward.1} parent=11 // pred_check_branch
          %377 = sbr.rel (%p375) target = $region32
        $region31: #{contextualizer_forward.1} parent=11 // pred_region
          _
        $region32: #{contextualizer_forward.1} parent=11 // pred_fallthru
          _
        // Predicated region
        $region33: #{contextualizer_forward.1} parent=11 // pred_check
          %p378 = pneg %p175
        $region34: #{contextualizer_forward.1} parent=11 // pred_check_branch
          %380 = sbr.rel (%p378) target = $region36
        $region35: #{contextualizer_forward.1} parent=11 // pred_region
          _
        $region36: #{contextualizer_forward.1} parent=11 // pred_fallthru
          _
        // Predicated region
        $region37: #{contextualizer_forward.1} parent=11 // pred_check
          %p381 = pneg %p196
        $region38: #{contextualizer_forward.1} parent=11 // pred_check_branch
          %383 = sbr.rel (%p381) target = $region40
        $region39: #{contextualizer_forward.1} parent=11 // pred_region
          _
        $region40: #{contextualizer_forward.1} parent=11 // pred_fallthru
          _
        // Predicated region
        $region41: #{contextualizer_forward.1} parent=11 // pred_check
          %p384 = pneg %p217
        $region42: #{contextualizer_forward.1} parent=11 // pred_check_branch
          %386 = sbr.rel (%p384) target = $region44
        $region43: #{contextualizer_forward.1} parent=11 // pred_region
          _
        $region44: #{contextualizer_forward.1} parent=11 // pred_fallthru
          _
        // Predicated region
        $region45: #{contextualizer_forward.1} parent=11 // pred_check
          %p387 = pneg %p238
        $region46: #{contextualizer_forward.1} parent=11 // pred_check_branch
          %389 = sbr.rel (%p387) target = $region48
        $region47: #{contextualizer_forward.1} parent=11 // pred_region
          _
        $region48: #{contextualizer_forward.1} parent=11 // pred_fallthru
          _
        // Predicated region
        $region49: #{contextualizer_forward.1} parent=11 // pred_check
          %p390 = pneg %p259
        $region50: #{contextualizer_forward.1} parent=11 // pred_check_branch
          %392 = sbr.rel (%p390) target = $region52
        $region51: #{contextualizer_forward.1} parent=11 // pred_region
          _
        $region52: #{contextualizer_forward.1} parent=11 // pred_fallthru
          _
        // Predicated region
        $region53: #{contextualizer_forward.1} parent=11 // pred_check
          %p393 = pneg %p280
        $region54: #{contextualizer_forward.1} parent=11 // pred_check_branch
          %395 = sbr.rel (%p393) target = $region56
        $region55: #{contextualizer_forward.1} parent=11 // pred_region
          _
        $region56: #{contextualizer_forward.1} parent=11 // pred_fallthru
          _
        // Predicated region
        $region57: #{contextualizer_forward.1} parent=11 // pred_check
          %p396 = pneg %p301
        $region58: #{contextualizer_forward.1} parent=11 // pred_check_branch
          %398 = sbr.rel (%p396) target = $region60
        $region59: #{contextualizer_forward.1} parent=11 // pred_region
          _
        $region60: #{contextualizer_forward.1} parent=11 // pred_fallthru
          _
        // Predicated region
        $region61: #{contextualizer_forward.1} parent=11 // pred_check
          %p399 = pneg %p322
        $region62: #{contextualizer_forward.1} parent=11 // pred_check_branch
          %401 = sbr.rel (%p399) target = $region64
        $region63: #{contextualizer_forward.1} parent=11 // pred_region
          _
        $region64: #{contextualizer_forward.1} parent=11 // pred_fallthru
          _
      $region12: #{contextualizer_forward.1} parent=5 // pred_fallthru
        _
      %p402 = scmp.lt.s32.totalorder %s23, 2
      // Predicated region
      $region65: #{contextualizer_forward.1} parent=5 // pred_check
        %p403 = pneg %p402
      $region66: #{contextualizer_forward.1} parent=5 // pred_check_branch
        %405 = sbr.rel (%p403) target = $region68
      $region67: #{contextualizer_forward.1} parent=5 // pred_region
        // Predicated region
        $region69: #{contextualizer_forward.1} parent=67 // pred_check
          %p406 = pneg %p43
        $region70: #{contextualizer_forward.1} parent=67 // pred_check_branch
          %408 = sbr.rel (%p406) target = $region72
        $region71: #{contextualizer_forward.1} parent=67 // pred_region
          %p409 = scmp.lt.s32.totalorder %s23, 1
          %s410 = scalar_select %p409, %s23, 1
          %s411 = smul.addr %s410, 8
          %s412 = scalar_lea.vmem %s0, %s411
        $region72: #{contextualizer_forward.1} parent=67 // pred_fallthru
          _
      $region68: #{contextualizer_forward.1} parent=5 // pred_fallthru
        _
      %p413 = scmp.le.s32.totalorder 1, %s23
      %p414 = scmp.lt.s32.totalorder %s23, 3
      %p415 = pnand %p413, %p414
      %p416 = pneg %p415
      // Predicated region
      $region73: #{contextualizer_forward.1} parent=5 // pred_check
        _
      $region74: #{contextualizer_forward.1} parent=5 // pred_check_branch
        %418 = sbr.rel (%p415) target = $region76
      $region75: #{contextualizer_forward.1} parent=5 // pred_region
        %s419 = ssub.s32 %s23, 1
        %p420 = scmp.lt.s32.totalorder %s28, 1
        %s421 = scalar_select %p420, %s28, 1
        %s422 = smul.addr %s421, 8
        %s423 = scalar_lea.vmem %s0, %s422
        %p424 = pneg %p49
        %p425 = pneg %p46
        %p426 = pneg %p70
        %p427 = pneg %p67
        %p428 = pneg %p91
        %p429 = pneg %p88
        %p430 = pneg %p112
        %p431 = pneg %p109
        %p432 = pneg %p133
        %p433 = pneg %p130
        %p434 = pneg %p154
        %p435 = pneg %p151
        %p436 = pneg %p175
        %p437 = pneg %p172
        %p438 = pneg %p196
        %p439 = pneg %p193
        %p440 = pneg %p217
        %p441 = pneg %p214
        %p442 = pneg %p238
        %p443 = pneg %p235
        %p444 = pneg %p259
        %p445 = pneg %p256
        %p446 = pneg %p280
        %p447 = pneg %p277
        %p448 = pneg %p301
        %p449 = pneg %p298
        %p450 = pneg %p322
        %p451 = pneg %p319
        %p452 = pneg %p348
        %p453 = pneg %p345
        %s454 = sand.u32 %s335, 1
        %s455 = scalar_lea.sflag [#allocation3], %s454
        %s456 = sand.u32 %s335, 1
        %s457 = smul.addr %s456, 8
        %s458 = scalar_lea.vmem [#allocation2], %s457
        %p459 = scmp.lt.s32.totalorder %s28, 1
        %s460 = scalar_select %p459, %s28, 1
        %s461 = smul.addr %s460, 8
        %s462 = scalar_lea.vmem %s0, %s461
        %v463 = vld [vmem:[%s1] sm:$0xff]
        %v464 = vld [vmem:[%s2] sm:$0xff]
        %v465 = vld [vmem:[%s2 + $0x8] sm:$0xff]
        %v466 = vld [vmem:[%s2 + $0x10] sm:$0xff]
        %v467 = vld [vmem:[%s2 + $0x18] sm:$0xff]
        %v468 = vld [vmem:[%s3] sm:$0xff]
        %v469 = vld [vmem:[%s3 + $0x8] sm:$0xff]
        %v470 = vld [vmem:[%s3 + $0x10] sm:$0xff]
        %v471 = vld [vmem:[%s3 + $0x18] sm:$0xff]
        %v472 = vld [vmem:[%s462] sm:$0xff]
        loop: start=0, step=1, limit=2
        $region77: #{contextualizer_forward.1} parent=75 // loop_pre_header
          _
        $region78: #{contextualizer_forward.1} parent=75 // loop_header
          %s474 = sphi 0, %s478
          %p475 = scmp.ge.s32.totalorder %s474, 2
          %v479 = vphi %v472, %v1040
        $region79: #{contextualizer_forward.1} parent=75 // loop_header_branch
          %477 = sbr.rel (%p475) target = $region83
        $region80: #{contextualizer_forward.1} parent=75 // loop_body
          %s480 = scalar_lea.vmem %s4, %s474
          %v481 = vld [vmem:[%s480] sm:$0x1]
          %s482 = scalar_lea.vmem %s5, %s474
          %v483 = vld [vmem:[%s482] sm:$0x1]
          %vm484 = vcmask 261120
          %v485 = vsel %vm484, %v479, 0.0
          %486 = vadd.xlane.f32.xlu0 %v485
          %v487 = vpop.xlane.xlu0 %486
          %v488 = vrcp.pop 32.0
          %v489 = vmul.f32 %v487, %v488
          %v490 = vsub.f32 %v479, %v489
          %v491 = vmul.f32 %v490, %v490
          %v492 = vsel %vm484, %v491, 0.0
          %493 = vadd.xlane.f32.xlu0 %v492
          %v494 = vpop.xlane.xlu0 %493
          %v495 = vmul.f32 %v494, %v488
          %v496 = vadd.f32 %v495, 1e-05
          %v497 = vrsqrt.pop %v496
          %v498 = vmul.f32 %v490, %v497
          %v500 = vlaneseq
          %v501 = vshrl.u32 %v500, 7
          %v502 = vsub.s32 0, %v501
          %v503 = vrot.slane %v481, %v502
          %v505 = vmul.f32 %v498, %v503
          %v507 = vlaneseq
          %v508 = vshrl.u32 %v507, 7
          %v509 = vsub.s32 0, %v508
          %v510 = vrot.slane %v483, %v509
          %v512 = vadd.f32 %v505, %v510
          %v514 = vsel %vm484, %v512, 0
          %516 = vmatprep.subr.mxu0 0.0
          %517 = vmatpush1.msra.mxu0 0.0
          %518 = vmatprep.subr.mxu0 0.0
          %519 = vmatpush1.msra.mxu0 0.0
          %520 = vmatprep.subr.mxu0 0.0
          %521 = vmatpush1.msra.mxu0 0.0
          %522 = vmatprep.subr.mxu0 0.0
          %523 = vmatpush1.msra.mxu0 0.0
          %524 = vmatprep.subr.mxu0 0.0
          %525 = vmatpush1.msra.mxu0 0.0
          %526 = vmatprep.subr.mxu0 0.0
          %527 = vmatpush1.msra.mxu0 0.0
          %528 = vmatprep.subr.mxu0 0.0
          %529 = vmatpush1.msra.mxu0 0.0
          %530 = vmatprep.subr.mxu0 0.0
          %531 = vmatpush1.msra.mxu0 0.0
          %532 = vmatprep.subr.mxu0 0.0
          %533 = vmatpush1.msra.mxu0 0.0
          %534 = vmatprep.subr.mxu0 0.0
          %535 = vmatpush1.msra.mxu0 0.0
          %536 = vmatprep.subr.mxu0 0.0
          %537 = vmatpush1.msra.mxu0 0.0
          %538 = vmatprep.subr.mxu0 0.0
          %539 = vmatpush1.msra.mxu0 0.0
          %540 = vmatprep.subr.mxu0 0.0
          %541 = vmatpush1.msra.mxu0 %v467
          %542 = vmatprep.subr.mxu0 0.0
          %543 = vmatpush1.msra.mxu0 %v466
          %544 = vmatprep.subr.mxu0 0.0
          %545 = vmatpush1.msra.mxu0 %v465
          %546 = vmatprep.subr.mxu0 0.0
          %547 = vmatpush1.msra.mxu0 %v464
          %548 = vmatprep.subr.mxu0 0.0
          %549 = vmatpush2.msra.mxu0 0.0
          %550 = vmatprep.subr.mxu0 0.0
          %551 = vmatpush2.msra.mxu0 0.0
          %552 = vmatprep.subr.mxu0 0.0
          %553 = vmatpush2.msra.mxu0 0.0
          %554 = vmatprep.subr.mxu0 0.0
          %555 = vmatpush2.msra.mxu0 0.0
          %556 = vmatprep.subr.mxu0 0.0
          %557 = vmatpush2.msra.mxu0 0.0
          %558 = vmatprep.subr.mxu0 0.0
          %559 = vmatpush2.msra.mxu0 0.0
          %560 = vmatprep.subr.mxu0 0.0
          %561 = vmatpush2.msra.mxu0 0.0
          %562 = vmatprep.subr.mxu0 0.0
          %563 = vmatpush2.msra.mxu0 0.0
          %564 = vmatprep.subr.mxu0 0.0
          %565 = vmatpush2.msra.mxu0 0.0
          %566 = vmatprep.subr.mxu0 0.0
          %567 = vmatpush2.msra.mxu0 0.0
          %568 = vmatprep.subr.mxu0 0.0
          %569 = vmatpush2.msra.mxu0 0.0
          %570 = vmatprep.subr.mxu0 0.0
          %571 = vmatpush2.msra.mxu0 0.0
          %572 = vmatprep.subr.mxu0 0.0
          %573 = vmatpush2.msra.mxu0 0.0
          %574 = vmatprep.subr.mxu0 0.0
          %575 = vmatpush2.msra.mxu0 0.0
          %576 = vmatprep.subr.mxu0 0.0
          %577 = vmatpush2.msra.mxu0 0.0
          %578 = vmatprep.subr.mxu0 0.0
          %579 = vmatpush2.msra.mxu0 0.0
          %580 = vmatprep.mubr.f32.mxu0 0.0
          %581 = vmatmul.mubr.f32.gmra.mxu0 %v514
          %v582 = vpop.f32.mrf.mxu0
          %v583 = vadd.f32 0.0, %v582
          %v584 = vpop.f32.mrf.mxu0
          %585 = vdwg.mxu0
          %v586 = vmul.f32 %v583, %v463
          %v587 = vsel %vm484, %v586, 0.0
          %v588 = vrot.slane %v587, 4
          %v589 = vadd.f32 %v587, %v588
          %v590 = vrot.slane %v589, 2
          %v591 = vadd.f32 %v589, %v590
          %v592 = vrot.slane %v591, 1
          %v593 = vadd.f32 %v591, %v592
          %s594 = smul.u32 %s474, 32
          %s595 = scalar_lea.vmem %s6, %s594
          %v596 = vld [vmem:[%s595] sm:$0xff]
          %v597 = vld [vmem:[%s595 + $0x8] sm:$0xff]
          %v598 = vld [vmem:[%s595 + $0x10] sm:$0xff]
          %v599 = vld [vmem:[%s595 + $0x18] sm:$0xff]
          %s600 = scalar_lea.vmem %s7, %s474
          %v601 = vld [vmem:[%s600] sm:$0x1]
          %v603 = vsel %vm484, %v593, 0
          %605 = vmatprep.subr.mxu0 0.0
          %606 = vmatpush1.msra.mxu0 0.0
          %607 = vmatprep.subr.mxu0 0.0
          %608 = vmatpush1.msra.mxu0 0.0
          %609 = vmatprep.subr.mxu0 0.0
          %610 = vmatpush1.msra.mxu0 0.0
          %611 = vmatprep.subr.mxu0 0.0
          %612 = vmatpush1.msra.mxu0 0.0
          %613 = vmatprep.subr.mxu0 0.0
          %614 = vmatpush1.msra.mxu0 0.0
          %615 = vmatprep.subr.mxu0 0.0
          %616 = vmatpush1.msra.mxu0 0.0
          %617 = vmatprep.subr.mxu0 0.0
          %618 = vmatpush1.msra.mxu0 0.0
          %619 = vmatprep.subr.mxu0 0.0
          %620 = vmatpush1.msra.mxu0 0.0
          %621 = vmatprep.subr.mxu0 0.0
          %622 = vmatpush1.msra.mxu0 0.0
          %623 = vmatprep.subr.mxu0 0.0
          %624 = vmatpush1.msra.mxu0 0.0
          %625 = vmatprep.subr.mxu0 0.0
          %626 = vmatpush1.msra.mxu0 0.0
          %627 = vmatprep.subr.mxu0 0.0
          %628 = vmatpush1.msra.mxu0 0.0
          %629 = vmatprep.subr.mxu0 0.0
          %630 = vmatpush1.msra.mxu0 %v599
          %631 = vmatprep.subr.mxu0 0.0
          %632 = vmatpush1.msra.mxu0 %v598
          %633 = vmatprep.subr.mxu0 0.0
          %634 = vmatpush1.msra.mxu0 %v597
          %635 = vmatprep.subr.mxu0 0.0
          %636 = vmatpush1.msra.mxu0 %v596
          %637 = vmatprep.subr.mxu0 0.0
          %638 = vmatpush2.msra.mxu0 0.0
          %639 = vmatprep.subr.mxu0 0.0
          %640 = vmatpush2.msra.mxu0 0.0
          %641 = vmatprep.subr.mxu0 0.0
          %642 = vmatpush2.msra.mxu0 0.0
          %643 = vmatprep.subr.mxu0 0.0
          %644 = vmatpush2.msra.mxu0 0.0
          %645 = vmatprep.subr.mxu0 0.0
          %646 = vmatpush2.msra.mxu0 0.0
          %647 = vmatprep.subr.mxu0 0.0
          %648 = vmatpush2.msra.mxu0 0.0
          %649 = vmatprep.subr.mxu0 0.0
          %650 = vmatpush2.msra.mxu0 0.0
          %651 = vmatprep.subr.mxu0 0.0
          %652 = vmatpush2.msra.mxu0 0.0
          %653 = vmatprep.subr.mxu0 0.0
          %654 = vmatpush2.msra.mxu0 0.0
          %655 = vmatprep.subr.mxu0 0.0
          %656 = vmatpush2.msra.mxu0 0.0
          %657 = vmatprep.subr.mxu0 0.0
          %658 = vmatpush2.msra.mxu0 0.0
          %659 = vmatprep.subr.mxu0 0.0
          %660 = vmatpush2.msra.mxu0 0.0
          %661 = vmatprep.subr.mxu0 0.0
          %662 = vmatpush2.msra.mxu0 0.0
          %663 = vmatprep.subr.mxu0 0.0
          %664 = vmatpush2.msra.mxu0 0.0
          %665 = vmatprep.subr.mxu0 0.0
          %666 = vmatpush2.msra.mxu0 0.0
          %667 = vmatprep.subr.mxu0 0.0
          %668 = vmatpush2.msra.mxu0 0.0
          %669 = vmatprep.mubr.f32.mxu0 0.0
          %670 = vmatmul.mubr.f32.gmra.mxu0 %v603
          %v671 = vpop.f32.mrf.mxu0
          %v672 = vadd.f32 %v601, %v671
          %v673 = vpop.f32.mrf.mxu0
          %674 = vdwg.mxu0
          %v675 = vmul.f32 %v672, 0.5
          %v676 = vmul.f32 %v672, 0.70710677
          %v677 = verf.f32.pop %v676
          %v678 = vadd.f32 %v677, 1.0
          %v679 = vmul.f32 %v675, %v678
          %s680 = smul.u32 %s474, 64
          %s681 = scalar_lea.vmem %s8, %s680
          %v682 = vld [vmem:[%s681] sm:$0xff]
          %v683 = vld [vmem:[%s681 + $0x8] sm:$0xff]
          %v684 = vld [vmem:[%s681 + $0x10] sm:$0xff]
          %v685 = vld [vmem:[%s681 + $0x18] sm:$0xff]
          %v686 = vld [vmem:[%s681 + $0x20] sm:$0xff]
          %v687 = vld [vmem:[%s681 + $0x28] sm:$0xff]
          %v688 = vld [vmem:[%s681 + $0x30] sm:$0xff]
          %v689 = vld [vmem:[%s681 + $0x38] sm:$0xff]
          %s690 = scalar_lea.vmem %s9, %s474
          %v691 = vld [vmem:[%s690] sm:$0x1]
          %vm692 = vcmask 523264
          %v694 = vsel %vm692, %v679, 0
          %696 = vmatprep.subr.mxu0 0.0
          %697 = vmatpush1.msra.mxu0 0.0
          %698 = vmatprep.subr.mxu0 0.0
          %699 = vmatpush1.msra.mxu0 0.0
          %700 = vmatprep.subr.mxu0 0.0
          %701 = vmatpush1.msra.mxu0 0.0
          %702 = vmatprep.subr.mxu0 0.0
          %703 = vmatpush1.msra.mxu0 0.0
          %704 = vmatprep.subr.mxu0 0.0
          %705 = vmatpush1.msra.mxu0 0.0
          %706 = vmatprep.subr.mxu0 0.0
          %707 = vmatpush1.msra.mxu0 0.0
          %708 = vmatprep.subr.mxu0 0.0
          %709 = vmatpush1.msra.mxu0 0.0
          %710 = vmatprep.subr.mxu0 0.0
          %711 = vmatpush1.msra.mxu0 0.0
          %712 = vmatprep.subr.mxu0 0.0
          %713 = vmatpush1.msra.mxu0 %v689
          %714 = vmatprep.subr.mxu0 0.0
          %715 = vmatpush1.msra.mxu0 %v688
          %716 = vmatprep.subr.mxu0 0.0
          %717 = vmatpush1.msra.mxu0 %v687
          %718 = vmatprep.subr.mxu0 0.0
          %719 = vmatpush1.msra.mxu0 %v686
          %720 = vmatprep.subr.mxu0 0.0
          %721 = vmatpush1.msra.mxu0 %v685
          %722 = vmatprep.subr.mxu0 0.0
          %723 = vmatpush1.msra.mxu0 %v684
          %724 = vmatprep.subr.mxu0 0.0
          %725 = vmatpush1.msra.mxu0 %v683
          %726 = vmatprep.subr.mxu0 0.0
          %727 = vmatpush1.msra.mxu0 %v682
          %728 = vmatprep.subr.mxu0 0.0
          %729 = vmatpush2.msra.mxu0 0.0
          %730 = vmatprep.subr.mxu0 0.0
          %731 = vmatpush2.msra.mxu0 0.0
          %732 = vmatprep.subr.mxu0 0.0
          %733 = vmatpush2.msra.mxu0 0.0
          %734 = vmatprep.subr.mxu0 0.0
          %735 = vmatpush2.msra.mxu0 0.0
          %736 = vmatprep.subr.mxu0 0.0
          %737 = vmatpush2.msra.mxu0 0.0
          %738 = vmatprep.subr.mxu0 0.0
          %739 = vmatpush2.msra.mxu0 0.0
          %740 = vmatprep.subr.mxu0 0.0
          %741 = vmatpush2.msra.mxu0 0.0
          %742 = vmatprep.subr.mxu0 0.0
          %743 = vmatpush2.msra.mxu0 0.0
          %744 = vmatprep.subr.mxu0 0.0
          %745 = vmatpush2.msra.mxu0 0.0
          %746 = vmatprep.subr.mxu0 0.0
          %747 = vmatpush2.msra.mxu0 0.0
          %748 = vmatprep.subr.mxu0 0.0
          %749 = vmatpush2.msra.mxu0 0.0
          %750 = vmatprep.subr.mxu0 0.0
          %751 = vmatpush2.msra.mxu0 0.0
          %752 = vmatprep.subr.mxu0 0.0
          %753 = vmatpush2.msra.mxu0 0.0
          %754 = vmatprep.subr.mxu0 0.0
          %755 = vmatpush2.msra.mxu0 0.0
          %756 = vmatprep.subr.mxu0 0.0
          %757 = vmatpush2.msra.mxu0 0.0
          %758 = vmatprep.subr.mxu0 0.0
          %759 = vmatpush2.msra.mxu0 0.0
          %760 = vmatprep.mubr.f32.mxu0 0.0
          %761 = vmatmul.mubr.f32.gmra.mxu0 %v694
          %v762 = vpop.f32.mrf.mxu0
          %v763 = vadd.f32 %v691, %v762
          %v764 = vpop.f32.mrf.mxu0
          %765 = vdwg.mxu0
          %v766 = vlaneseq
          %v767 = vshrl.u32 %v766, 7
          %v768 = vsub.s32 0, %v767
          %v769 = vrot.slane %v763, %v768
          %v770 = vmul.f32 %v463, %v769
          %v772 = vsel %vm484, %v770, 0
          %774 = vmatprep.subr.mxu0 0.0
          %775 = vmatpush1.msra.mxu0 0.0
          %776 = vmatprep.subr.mxu0 0.0
          %777 = vmatpush1.msra.mxu0 0.0
          %778 = vmatprep.subr.mxu0 0.0
          %779 = vmatpush1.msra.mxu0 0.0
          %780 = vmatprep.subr.mxu0 0.0
          %781 = vmatpush1.msra.mxu0 0.0
          %782 = vmatprep.subr.mxu0 0.0
          %783 = vmatpush1.msra.mxu0 0.0
          %784 = vmatprep.subr.mxu0 0.0
          %785 = vmatpush1.msra.mxu0 0.0
          %786 = vmatprep.subr.mxu0 0.0
          %787 = vmatpush1.msra.mxu0 0.0
          %788 = vmatprep.subr.mxu0 0.0
          %789 = vmatpush1.msra.mxu0 0.0
          %790 = vmatprep.subr.mxu0 0.0
          %791 = vmatpush1.msra.mxu0 0.0
          %792 = vmatprep.subr.mxu0 0.0
          %793 = vmatpush1.msra.mxu0 0.0
          %794 = vmatprep.subr.mxu0 0.0
          %795 = vmatpush1.msra.mxu0 0.0
          %796 = vmatprep.subr.mxu0 0.0
          %797 = vmatpush1.msra.mxu0 0.0
          %798 = vmatprep.subr.mxu0 0.0
          %799 = vmatpush1.msra.mxu0 %v471
          %800 = vmatprep.subr.mxu0 0.0
          %801 = vmatpush1.msra.mxu0 %v470
          %802 = vmatprep.subr.mxu0 0.0
          %803 = vmatpush1.msra.mxu0 %v469
          %804 = vmatprep.subr.mxu0 0.0
          %805 = vmatpush1.msra.mxu0 %v468
          %806 = vmatprep.subr.mxu0 0.0
          %807 = vmatpush2.msra.mxu0 0.0
          %808 = vmatprep.subr.mxu0 0.0
          %809 = vmatpush2.msra.mxu0 0.0
          %810 = vmatprep.subr.mxu0 0.0
          %811 = vmatpush2.msra.mxu0 0.0
          %812 = vmatprep.subr.mxu0 0.0
          %813 = vmatpush2.msra.mxu0 0.0
          %814 = vmatprep.subr.mxu0 0.0
          %815 = vmatpush2.msra.mxu0 0.0
          %816 = vmatprep.subr.mxu0 0.0
          %817 = vmatpush2.msra.mxu0 0.0
          %818 = vmatprep.subr.mxu0 0.0
          %819 = vmatpush2.msra.mxu0 0.0
          %820 = vmatprep.subr.mxu0 0.0
          %821 = vmatpush2.msra.mxu0 0.0
          %822 = vmatprep.subr.mxu0 0.0
          %823 = vmatpush2.msra.mxu0 0.0
          %824 = vmatprep.subr.mxu0 0.0
          %825 = vmatpush2.msra.mxu0 0.0
          %826 = vmatprep.subr.mxu0 0.0
          %827 = vmatpush2.msra.mxu0 0.0
          %828 = vmatprep.subr.mxu0 0.0
          %829 = vmatpush2.msra.mxu0 0.0
          %830 = vmatprep.subr.mxu0 0.0
          %831 = vmatpush2.msra.mxu0 0.0
          %832 = vmatprep.subr.mxu0 0.0
          %833 = vmatpush2.msra.mxu0 0.0
          %834 = vmatprep.subr.mxu0 0.0
          %835 = vmatpush2.msra.mxu0 0.0
          %836 = vmatprep.subr.mxu0 0.0
          %837 = vmatpush2.msra.mxu0 0.0
          %838 = vmatprep.mubr.f32.mxu0 0.0
          %839 = vmatmul.mubr.f32.gmra.mxu0 %v772
          %v840 = vpop.f32.mrf.mxu0
          %v841 = vadd.f32 %v479, %v840
          %v842 = vpop.f32.mrf.mxu0
          %843 = vdwg.mxu0
          %v844 = vsel %vm484, %v841, 0.0
          %845 = vadd.xlane.f32.xlu0 %v844
          %v846 = vpop.xlane.xlu0 %845
          %v847 = vmul.f32 %v846, %v488
          %v848 = vsub.f32 %v841, %v847
          %v849 = vmul.f32 %v848, %v848
          %v850 = vsel %vm484, %v849, 0.0
          %851 = vadd.xlane.f32.xlu0 %v850
          %v852 = vpop.xlane.xlu0 %851
          %v853 = vmul.f32 %v852, %v488
          %v854 = vadd.f32 %v853, 1e-05
          %v855 = vrsqrt.pop %v854
          %v856 = vmul.f32 %v848, %v855
          %v857 = vmul.f32 %v856, %v503
          %v858 = vadd.f32 %v857, %v510
          %s859 = scalar_lea.vmem %s10, %s594
          %v860 = vld [vmem:[%s859] sm:$0xff]
          %v861 = vld [vmem:[%s859 + $0x8] sm:$0xff]
          %v862 = vld [vmem:[%s859 + $0x10] sm:$0xff]
          %v863 = vld [vmem:[%s859 + $0x18] sm:$0xff]
          %s864 = scalar_lea.vmem %s11, %s474
          %v865 = vld [vmem:[%s864] sm:$0x1]
          %v867 = vlaneseq
          %v868 = vshrl.u32 %v867, 7
          %v869 = vsub.s32 0, %v868
          %v870 = vrot.slane %v865, %v869
          %v873 = vsel %vm484, %v858, 0
          %875 = vmatprep.subr.mxu0 0.0
          %876 = vmatpush1.msra.mxu0 0.0
          %877 = vmatprep.subr.mxu0 0.0
          %878 = vmatpush1.msra.mxu0 0.0
          %879 = vmatprep.subr.mxu0 0.0
          %880 = vmatpush1.msra.mxu0 0.0
          %881 = vmatprep.subr.mxu0 0.0
          %882 = vmatpush1.msra.mxu0 0.0
          %883 = vmatprep.subr.mxu0 0.0
          %884 = vmatpush1.msra.mxu0 0.0
          %885 = vmatprep.subr.mxu0 0.0
          %886 = vmatpush1.msra.mxu0 0.0
          %887 = vmatprep.subr.mxu0 0.0
          %888 = vmatpush1.msra.mxu0 0.0
          %889 = vmatprep.subr.mxu0 0.0
          %890 = vmatpush1.msra.mxu0 0.0
          %891 = vmatprep.subr.mxu0 0.0
          %892 = vmatpush1.msra.mxu0 0.0
          %893 = vmatprep.subr.mxu0 0.0
          %894 = vmatpush1.msra.mxu0 0.0
          %895 = vmatprep.subr.mxu0 0.0
          %896 = vmatpush1.msra.mxu0 0.0
          %897 = vmatprep.subr.mxu0 0.0
          %898 = vmatpush1.msra.mxu0 0.0
          %899 = vmatprep.subr.mxu0 0.0
          %900 = vmatpush1.msra.mxu0 %v863
          %901 = vmatprep.subr.mxu0 0.0
          %902 = vmatpush1.msra.mxu0 %v862
          %903 = vmatprep.subr.mxu0 0.0
          %904 = vmatpush1.msra.mxu0 %v861
          %905 = vmatprep.subr.mxu0 0.0
          %906 = vmatpush1.msra.mxu0 %v860
          %907 = vmatprep.subr.mxu0 0.0
          %908 = vmatpush2.msra.mxu0 0.0
          %909 = vmatprep.subr.mxu0 0.0
          %910 = vmatpush2.msra.mxu0 0.0
          %911 = vmatprep.subr.mxu0 0.0
          %912 = vmatpush2.msra.mxu0 0.0
          %913 = vmatprep.subr.mxu0 0.0
          %914 = vmatpush2.msra.mxu0 0.0
          %915 = vmatprep.subr.mxu0 0.0
          %916 = vmatpush2.msra.mxu0 0.0
          %917 = vmatprep.subr.mxu0 0.0
          %918 = vmatpush2.msra.mxu0 0.0
          %919 = vmatprep.subr.mxu0 0.0
          %920 = vmatpush2.msra.mxu0 0.0
          %921 = vmatprep.subr.mxu0 0.0
          %922 = vmatpush2.msra.mxu0 0.0
          %923 = vmatprep.subr.mxu0 0.0
          %924 = vmatpush2.msra.mxu0 0.0
          %925 = vmatprep.subr.mxu0 0.0
          %926 = vmatpush2.msra.mxu0 0.0
          %927 = vmatprep.subr.mxu0 0.0
          %928 = vmatpush2.msra.mxu0 0.0
          %929 = vmatprep.subr.mxu0 0.0
          %930 = vmatpush2.msra.mxu0 0.0
          %931 = vmatprep.subr.mxu0 0.0
          %932 = vmatpush2.msra.mxu0 0.0
          %933 = vmatprep.subr.mxu0 0.0
          %934 = vmatpush2.msra.mxu0 0.0
          %935 = vmatprep.subr.mxu0 0.0
          %936 = vmatpush2.msra.mxu0 0.0
          %937 = vmatprep.subr.mxu0 0.0
          %938 = vmatpush2.msra.mxu0 0.0
          %939 = vmatprep.mubr.f32.mxu0 0.0
          %940 = vmatmul.mubr.f32.gmra.mxu0 %v873
          %v941 = vpop.f32.mrf.mxu0
          %v942 = vadd.f32 %v870, %v941
          %v943 = vpop.f32.mrf.mxu0
          %944 = vdwg.mxu0
          %v945 = vmul.f32 %v942, 0.5
          %v946 = vmul.f32 %v942, 0.70710677
          %v947 = verf.f32.pop %v946
          %v948 = vadd.f32 %v947, 1.0
          %v949 = vmul.f32 %v945, %v948
          %s950 = scalar_lea.vmem %s12, %s680
          %v951 = vld [vmem:[%s950] sm:$0xff]
          %v952 = vld [vmem:[%s950 + $0x8] sm:$0xff]
          %v953 = vld [vmem:[%s950 + $0x10] sm:$0xff]
          %v954 = vld [vmem:[%s950 + $0x18] sm:$0xff]
          %v955 = vld [vmem:[%s950 + $0x20] sm:$0xff]
          %v956 = vld [vmem:[%s950 + $0x28] sm:$0xff]
          %v957 = vld [vmem:[%s950 + $0x30] sm:$0xff]
          %v958 = vld [vmem:[%s950 + $0x38] sm:$0xff]
          %s959 = scalar_lea.vmem %s13, %s474
          %v960 = vld [vmem:[%s959] sm:$0x1]
          %v962 = vlaneseq
          %v963 = vshrl.u32 %v962, 7
          %v964 = vsub.s32 0, %v963
          %v965 = vrot.slane %v960, %v964
          %v968 = vsel %vm692, %v949, 0
          %970 = vmatprep.subr.mxu0 0.0
          %971 = vmatpush1.msra.mxu0 0.0
          %972 = vmatprep.subr.mxu0 0.0
          %973 = vmatpush1.msra.mxu0 0.0
          %974 = vmatprep.subr.mxu0 0.0
          %975 = vmatpush1.msra.mxu0 0.0
          %976 = vmatprep.subr.mxu0 0.0
          %977 = vmatpush1.msra.mxu0 0.0
          %978 = vmatprep.subr.mxu0 0.0
          %979 = vmatpush1.msra.mxu0 0.0
          %980 = vmatprep.subr.mxu0 0.0
          %981 = vmatpush1.msra.mxu0 0.0
          %982 = vmatprep.subr.mxu0 0.0
          %983 = vmatpush1.msra.mxu0 0.0
          %984 = vmatprep.subr.mxu0 0.0
          %985 = vmatpush1.msra.mxu0 0.0
          %986 = vmatprep.subr.mxu0 0.0
          %987 = vmatpush1.msra.mxu0 %v958
          %988 = vmatprep.subr.mxu0 0.0
          %989 = vmatpush1.msra.mxu0 %v957
          %990 = vmatprep.subr.mxu0 0.0
          %991 = vmatpush1.msra.mxu0 %v956
          %992 = vmatprep.subr.mxu0 0.0
          %993 = vmatpush1.msra.mxu0 %v955
          %994 = vmatprep.subr.mxu0 0.0
          %995 = vmatpush1.msra.mxu0 %v954
          %996 = vmatprep.subr.mxu0 0.0
          %997 = vmatpush1.msra.mxu0 %v953
          %998 = vmatprep.subr.mxu0 0.0
          %999 = vmatpush1.msra.mxu0 %v952
          %1000 = vmatprep.subr.mxu0 0.0
          %1001 = vmatpush1.msra.mxu0 %v951
          %1002 = vmatprep.subr.mxu0 0.0
          %1003 = vmatpush2.msra.mxu0 0.0
          %1004 = vmatprep.subr.mxu0 0.0
          %1005 = vmatpush2.msra.mxu0 0.0
          %1006 = vmatprep.subr.mxu0 0.0
          %1007 = vmatpush2.msra.mxu0 0.0
          %1008 = vmatprep.subr.mxu0 0.0
          %1009 = vmatpush2.msra.mxu0 0.0
          %1010 = vmatprep.subr.mxu0 0.0
          %1011 = vmatpush2.msra.mxu0 0.0
          %1012 = vmatprep.subr.mxu0 0.0
          %1013 = vmatpush2.msra.mxu0 0.0
          %1014 = vmatprep.subr.mxu0 0.0
          %1015 = vmatpush2.msra.mxu0 0.0
          %1016 = vmatprep.subr.mxu0 0.0
          %1017 = vmatpush2.msra.mxu0 0.0
          %1018 = vmatprep.subr.mxu0 0.0
          %1019 = vmatpush2.msra.mxu0 0.0
          %1020 = vmatprep.subr.mxu0 0.0
          %1021 = vmatpush2.msra.mxu0 0.0
          %1022 = vmatprep.subr.mxu0 0.0
          %1023 = vmatpush2.msra.mxu0 0.0
          %1024 = vmatprep.subr.mxu0 0.0
          %1025 = vmatpush2.msra.mxu0 0.0
          %1026 = vmatprep.subr.mxu0 0.0
          %1027 = vmatpush2.msra.mxu0 0.0
          %1028 = vmatprep.subr.mxu0 0.0
          %1029 = vmatpush2.msra.mxu0 0.0
          %1030 = vmatprep.subr.mxu0 0.0
          %1031 = vmatpush2.msra.mxu0 0.0
          %1032 = vmatprep.subr.mxu0 0.0
          %1033 = vmatpush2.msra.mxu0 0.0
          %1034 = vmatprep.mubr.f32.mxu0 0.0
          %1035 = vmatmul.mubr.f32.gmra.mxu0 %v968
          %v1036 = vpop.f32.mrf.mxu0
          %v1037 = vadd.f32 %v965, %v1036
          %v1038 = vpop.f32.mrf.mxu0
          %1039 = vdwg.mxu0
          %v1040 = vadd.f32 %v1037, %v841
        $region81: #{contextualizer_forward.1} parent=75 // loop_footer
          %s478 = sadd.s32 1, %s474
        $region82: #{contextualizer_forward.1} parent=75 // loop_footer_branch
          %473 = sbr.rel target = $region78
        $region83: #{contextualizer_forward.1} parent=75 // loop_exit
          _
        %vm1041 = vcmask 261120
        %1042 = vst.msk [vmem:[%s458] sm:$0xff] %vm1041, %v479
        %s1043 = sand.u32 %s335, 1
        %s1044 = scalar_lea.sflag [#allocation3], %s1043
        %s1045 = sand.u32 %s335, 1
        %s1046 = smul.addr %s1045, 8
        %s1047 = scalar_lea.vmem [#allocation2], %s1046
        // Predicated region
        $region84: #{contextualizer_forward.1} parent=75 // pred_check
          %p1048 = pneg %p345
        $region85: #{contextualizer_forward.1} parent=75 // pred_check_branch
          %1050 = sbr.rel (%p1048) target = $region87
        $region86: #{contextualizer_forward.1} parent=75 // pred_region
          %s1052 = ssub.s32 128, 128
          %1053 = vsyncadd %s1044, %s1052
          %s1054 = smul.addr %s28, 128
          %s1055 = scalar_lea.hbm %s14, %s1054
          %s1057 = sshll.u32 %s1047, 4
          %s1058 = int_to_ptr.vmem [resolvable:$true] %s1057
          %1060 = dma.vmem_to_hbm [thread:$0]  %s1058, 128, %s1055, %s1044
        $region87: #{contextualizer_forward.1} parent=75 // pred_fallthru
          _
      $region76: #{contextualizer_forward.1} parent=5 // pred_fallthru
        _
      %p1061 = scmp.le.s32.totalorder 2, %s23
      // Predicated region
      $region88: #{contextualizer_forward.1} parent=5 // pred_check
        %p1062 = pneg %p1061
      $region89: #{contextualizer_forward.1} parent=5 // pred_check_branch
        %1064 = sbr.rel (%p1062) target = $region91
      $region90: #{contextualizer_forward.1} parent=5 // pred_region
        %s1065 = ssub.s32 %s23, 2
        // Predicated region
        $region92: #{contextualizer_forward.1} parent=90 // pred_check
          %p1066 = pneg %p351
        $region93: #{contextualizer_forward.1} parent=90 // pred_check_branch
          %1068 = sbr.rel (%p1066) target = $region95
        $region94: #{contextualizer_forward.1} parent=90 // pred_region
          %s1069 = sand.u32 %s336, 1
          %s1070 = scalar_lea.sflag [#allocation3], %s1069
          %s1071 = sand.u32 %s336, 1
          %s1072 = smul.addr %s1071, 8
          %s1073 = scalar_lea.vmem [#allocation2], %s1072
          %1074 = dma.done %s1070, 128
        $region95: #{contextualizer_forward.1} parent=90 // pred_fallthru
          _
      $region91: #{contextualizer_forward.1} parent=5 // pred_fallthru
        _
    $region6: #{contextualizer_forward.1} parent=1 // loop_footer
      %s27 = sadd.s32 1, %s23
    $region7: #{contextualizer_forward.1} parent=1 // loop_footer_branch
      %22 = sbr.rel target = $region3
    $region8: #{contextualizer_forward.1} parent=1 // loop_exit
      _
    %1075 = vsyncpa [#allocation3], 1
    %s1076 = scalar_lea.sflag [#allocation3], 1
    %1077 = vsyncpa %s1076, 1

</llo_original>
